<compile_context>
chip_gen: v7x
topology: tpu7x:2x2x1
jax: 0.10.0
libtpu: 0.0.40
codegen_flags: <defaults>
</compile_context>

<pallas_src>
import functools

import jax
import jax.numpy as jnp
from jax import lax
from jax.experimental import pallas as pl
from jax.experimental.pallas import tpu as pltpu


def _round_up(v, m):
    return (v + m - 1) // m * m


def _vmem_budget_bytes():
    """Generation-aware VMEM limit (v7x: 64 MiB/TC, v5e/v6e: 128 MiB)."""
    phys = 64 * 1024 * 1024  # conservative fallback
    try:
        info = pltpu.get_tpu_info()
        v = getattr(info, "vmem_capacity_bytes", None)
        if v:
            phys = int(v)
    except Exception:
        pass
    return int(min(phys * 3 // 4, 96 * 1024 * 1024))


# ---------------------------------------------------------------------------
# Pass 1: strided 3x3 conv (3 accumulated MXU matmuls, kw folded into K)
#         + per-channel sum / sum-of-squares (resident f32 accumulators).
# Grid: (m_split [parallel], cout_tiles [parallel], OH [arb], M_tiles [arb])
# ---------------------------------------------------------------------------
def _conv_stats_kernel(w_ref, x0_ref, x1_ref, x2_ref, conv_ref, sum_ref, sq_ref):
    # Stat accumulators are resident per (split, cout-tile); init at their start.
    @pl.when(jnp.logical_and(pl.program_id(2) == 0, pl.program_id(3) == 0))
    def _():
        sum_ref[...] = jnp.zeros_like(sum_ref)
        sq_ref[...] = jnp.zeros_like(sq_ref)

    # One matmul per kh row tap; K = 3*C_pad (the 3 kw taps live in K).
    acc = jnp.dot(w_ref[0], x0_ref[0], preferred_element_type=jnp.float32)
    acc = acc + jnp.dot(w_ref[1], x1_ref[0], preferred_element_type=jnp.float32)
    acc = acc + jnp.dot(w_ref[2], x2_ref[0], preferred_element_type=jnp.float32)

    # Staging write (bf16 on the fast path) -- stats come from the f32 acc.
    conv_ref[0] = acc.astype(conv_ref.dtype)

    sum_ref[0] = sum_ref[0] + jnp.sum(acc, axis=1, keepdims=True)
    sq_ref[0] = sq_ref[0] + jnp.sum(acc * acc, axis=1, keepdims=True)


# ---------------------------------------------------------------------------
# Pass 2: y = scale * conv + shift, then LeakyReLU.  Pure HBM-bound FMA+select.
# ---------------------------------------------------------------------------
def _make_bn_lrelu_kernel(neg_slope):
    def kernel(conv_ref, ss_ref, out_ref):
        conv = conv_ref[0].astype(jnp.float32)       # upcast; all math in f32 (v5e safe)
        scale = ss_ref[0, :, 0:1]                    # (TCO, 1)
        shift = ss_ref[1, :, 0:1]
        y = conv * scale + shift
        out_ref[0] = jnp.where(y > 0, y, neg_slope * y).astype(out_ref.dtype)
    return kernel


@functools.partial(jax.jit, static_argnames=("use_bf16", "eps", "neg_slope"))
def downsampling_forward(x, weight, bias, gamma, beta, *,
                         use_bf16=True, eps=1e-5, neg_slope=0.01):
    """x: (N, C, H, W); weight: (Cout, C, 3, 3). Returns (N, Cout, H//2, W//2)."""
    del bias  # Exact cancellation under training-mode BatchNorm (mean-subtracted).

    n, c, h, w = x.shape
    cout = weight.shape[0]
    oh = (h + 2 - 3) // 2 + 1
    ow = (w + 2 - 3) // 2 + 1

    compute_dtype = jnp.bfloat16 if use_bf16 else jnp.float32
    stage_dtype = jnp.bfloat16 if use_bf16 else jnp.float32   # inter-pass staging
    out_dtype = x.dtype
    in_isz = jnp.dtype(compute_dtype).itemsize
    st_isz = jnp.dtype(stage_dtype).itemsize
    out_isz = jnp.dtype(out_dtype).itemsize

    # ---- aligned sizes (sublane mult-of-8, lane mult-of-128) ----------------
    c_pad = _round_up(c, 8)
    k_dim = 3 * c_pad                       # folded contraction depth
    cout_pad = _round_up(cout, 8)
    if cout_pad > 128:
        cout_pad = _round_up(cout_pad, 128)
        tco = 256 if cout_pad % 256 == 0 else 128   # halve co_tiles when possible
    else:
        tco = cout_pad
    co_tiles = cout_pad // tco

    m = n * ow                              # lane axis = flattened (batch, out-col)
    m128 = _round_up(m, 128)

    vmem_limit = _vmem_budget_bytes()

    def _pass1_vmem(tm_):
        x_blocks = 3 * k_dim * tm_ * in_isz
        conv_block = tco * tm_ * st_isz
        w_block = 3 * tco * k_dim * in_isz
        stats = 2 * tco * 128 * 4
        return 2 * (x_blocks + conv_block + w_block + stats)   # double-buffered

    tm = 128
    for cand in (2048, 1024, 512, 256, 128):
        if cand <= max(m128, 128) and _pass1_vmem(cand) <= int(0.6 * vmem_limit):
            tm = cand
            break
    m_pad = _round_up(m128, tm)
    m_tiles_total = m_pad // tm
    # Extra leading parallel axis (helps v7x's 2 TensorCores when co_tiles == 1).
    n_split = 2 if (m_tiles_total >= 2 and m_tiles_total % 2 == 0) else 1
    m_half_tiles = m_tiles_total // n_split

    # ---- glue: pad + stride-2 column decimation, kw folded into channels ----
    # TODO(synk): when N*OW is tiny (< ~512) a row-predecimated (N*OH*OW) lane
    # layout would remove the OH grid axis; not needed for correctness here.
    xp = jnp.pad(x, ((0, 0), (0, 0), (1, 1), (1, 1)))            # (N, C, H+2, W+2)
    xt = jnp.transpose(xp, (2, 1, 0, 3))                          # (H+2, C, N, W+2)
    slabs = []
    for kw in range(3):
        xk = xt[:, :, :, kw:kw + 2 * ow:2].reshape(h + 2, c, m)   # (H+2, C, M)
        xk = jnp.pad(xk, ((0, 0), (0, c_pad - c), (0, m_pad - m)))
        slabs.append(xk)
    x_slab = jnp.concatenate(slabs, axis=1).astype(compute_dtype)  # (H+2, 3*C_pad, M_pad)

    # Weights: (Cout, Cin, 3, 3) -> (3, Cout_pad, 3*C_pad); K order = kw-major
    # blocks of C_pad, matching the x_slab channel concatenation.
    wt = jnp.transpose(weight, (2, 3, 0, 1))                      # (3, 3, Cout, Cin)
    wt = jnp.pad(wt, ((0, 0), (0, 0), (0, cout_pad - cout), (0, c_pad - c)))
    w3 = jnp.transpose(wt, (0, 2, 1, 3)).reshape(3, cout_pad, k_dim)
    w3 = w3.astype(compute_dtype)

    # ---- pass 1: conv + per-channel partial statistics ----------------------
    w_spec = pl.BlockSpec((3, tco, k_dim), lambda p, co, r, mt: (0, co, 0))

    def x_spec(kh):
        # Leading H dim has block size 1, so the index_map picks row 2*r + kh.
        return pl.BlockSpec(
            (1, k_dim, tm),
            lambda p, co, r, mt: (2 * r + kh, 0, p * m_half_tiles + mt))

    conv_spec = pl.BlockSpec(
        (1, tco, tm), lambda p, co, r, mt: (r, co, p * m_half_tiles + mt))
    stat_spec = pl.BlockSpec((1, tco, 128), lambda p, co, r, mt: (p, co, 0))

    cost1 = pl.CostEstimate(
        flops=int(2 * 9 * c_pad * cout_pad * oh * m_pad),
        transcendentals=0,
        bytes_accessed=int(co_tiles * oh * m_pad * 9 * c_pad * in_isz
                           + w3.size * in_isz
                           + oh * cout_pad * m_pad * st_isz
                           + 2 * n_split * cout_pad * 128 * 4))

    conv_out, sum_out, sq_out = pl.pallas_call(
        _conv_stats_kernel,
        grid=(n_split, co_tiles, oh, m_half_tiles),
        in_specs=[w_spec, x_spec(0), x_spec(1), x_spec(2)],
        out_specs=[conv_spec, stat_spec, stat_spec],
        out_shape=[
            jax.ShapeDtypeStruct((oh, cout_pad, m_pad), stage_dtype),   # staging
            jax.ShapeDtypeStruct((n_split, cout_pad, 128), jnp.float32),  # sum
            jax.ShapeDtypeStruct((n_split, cout_pad, 128), jnp.float32),  # sumsq
        ],
        compiler_params=pltpu.CompilerParams(
            dimension_semantics=("parallel", "parallel", "arbitrary", "arbitrary"),
            vmem_limit_bytes=vmem_limit),
        cost_estimate=cost1,
    )(w3, x_slab, x_slab, x_slab)

    # ---- between passes: fold BN into per-channel scale/shift (tiny jnp) ----
    inv_count = 1.0 / float(n * oh * ow)      # true element count (padding is zeros)
    s1 = jnp.sum(sum_out[:, :, 0], axis=0)    # (Cout_pad,)
    s2 = jnp.sum(sq_out[:, :, 0], axis=0)
    mean = s1 * inv_count
    var = jnp.maximum(s2 * inv_count - mean * mean, 0.0)   # guard f32 cancellation
    g_p = jnp.pad(gamma.astype(jnp.float32), (0, cout_pad - cout))
    b_p = jnp.pad(beta.astype(jnp.float32), (0, cout_pad - cout))
    scale = g_p * lax.rsqrt(var + eps)
    shift = b_p - scale * mean
    ss = jnp.broadcast_to(jnp.stack([scale, shift])[:, :, None],
                          (2, cout_pad, 128)).astype(jnp.float32)

    # ---- pass 2: scale/shift FMA + LeakyReLU (independent, larger tiles) ----
    tm2 = tm
    for mult in (16, 8, 4, 2):
        cand = tm * mult
        if (m_tiles_total % mult == 0 and cand <= 4096
                and 2 * tco * cand * (st_isz + out_isz) + 2 * tco * 128 * 4
                <= int(0.5 * vmem_limit)):
            tm2 = cand
            break
    m2_tiles = m_pad // tm2

    conv_spec2 = pl.BlockSpec((1, tco, tm2), lambda co, r, mt: (r, co, mt))
    ss_spec = pl.BlockSpec((2, tco, 128), lambda co, r, mt: (0, co, 0))
    out_spec2 = pl.BlockSpec((1, tco, tm2), lambda co, r, mt: (r, co, mt))

    cost2 = pl.CostEstimate(
        flops=int(4 * oh * cout_pad * m_pad),
        transcendentals=0,
        bytes_accessed=int(oh * cout_pad * m_pad * (st_isz + out_isz)
                           + 2 * cout_pad * 128 * 4))

    y = pl.pallas_call(
        _make_bn_lrelu_kernel(float(neg_slope)),
        grid=(co_tiles, oh, m2_tiles),
        in_specs=[conv_spec2, ss_spec],
        out_specs=out_spec2,
        out_shape=jax.ShapeDtypeStruct((oh, cout_pad, m_pad), out_dtype),
        compiler_params=pltpu.CompilerParams(
            dimension_semantics=("parallel", "parallel", "parallel"),
            vmem_limit_bytes=vmem_limit),
        cost_estimate=cost2,
    )(conv_out, ss)

    # ---- boundary: internal (OH, Cout, N*OW) -> NCHW -------------------------
    # TODO(synk): when N*OW is a multiple of 128 this could be fused into pass
    # 2's out BlockSpec; at small OW the lane-dense internal layout wins, so the
    # single small XLA transpose (already in x.dtype) is kept.
    y = y[:, :cout, :m].reshape(oh, cout, n, ow)
    return jnp.transpose(y, (2, 1, 0, 3))


def _reference_forward(x, weight, bias, gamma, beta):
    """Pure-JAX reference mirroring the PyTorch module (training-mode BN)."""
    conv = lax.conv_general_dilated(
        x, weight, window_strides=(2, 2), padding=((1, 1), (1, 1)),
        dimension_numbers=("NCHW", "OIHW", "NCHW"))
    conv = conv + bias.reshape(1, -1, 1, 1)
    mean = jnp.mean(conv, axis=(0, 2, 3), keepdims=True)
    var = jnp.mean((conv - mean) ** 2, axis=(0, 2, 3), keepdims=True)
    y = gamma.reshape(1, -1, 1, 1) * (conv - mean) * lax.rsqrt(var + 1e-5) \
        + beta.reshape(1, -1, 1, 1)
    return jnp.where(y > 0, y, 0.01 * y)


if __name__ == "__main__":
    key = jax.random.PRNGKey(0)
    k_x, k_w, k_b, k_g, k_be = jax.random.split(key, 5)

    N, C, H, W = 2, 4, 16, 16
    x = jax.random.normal(k_x, (N, C, H, W), dtype=jnp.float32)

    # Deterministic synthetic parameters (Conv2d(C, C, 3) / BatchNorm2d(C)).
    fan_in = C * 3 * 3
    bound = 1.0 / (fan_in ** 0.5)
    weight = jax.random.uniform(k_w, (C, C, 3, 3), jnp.float32, -bound, bound)
    bias = jax.random.uniform(k_b, (C,), jnp.float32, -bound, bound)
    gamma = 1.0 + 0.1 * jax.random.normal(k_g, (C,), dtype=jnp.float32)
    beta = 0.1 * jax.random.normal(k_be, (C,), dtype=jnp.float32)

    ref = jax.block_until_ready(_reference_forward(x, weight, bias, gamma, beta))

    # Exact-precision path (f32 matmul inputs, f32 staging).
    out_fp32 = jax.block_until_ready(
        downsampling_forward(x, weight, bias, gamma, beta, use_bf16=False))
    assert out_fp32.shape == (N, C, H // 2, W // 2), out_fp32.shape
    assert jnp.allclose(out_fp32, ref, atol=1e-4, rtol=1e-4)

    # MXU-native bf16 path (f32 accumulation, bf16 staging) -- looser tolerance.
    out_bf16 = jax.block_until_ready(
        downsampling_forward(x, weight, bias, gamma, beta, use_bf16=True))
    assert out_bf16.shape == (N, C, H // 2, W // 2), out_bf16.shape
    assert jnp.allclose(out_bf16, ref, atol=3e-2, rtol=3e-2)

    print("KERNEL_OK")
</pallas_src>

<mosaic_0001>
module attributes {stable_mosaic.version = 11 : i64} {
  func.func @_conv_stats_kernel(%arg0: i32, %arg1: i32, %arg2: i32, %arg3: i32, %arg4: memref<3x8x24xf32, #tpu.memory_space<vmem>>, %arg5: memref<1x24x128xf32, #tpu.memory_space<vmem>>, %arg6: memref<1x24x128xf32, #tpu.memory_space<vmem>>, %arg7: memref<1x24x128xf32, #tpu.memory_space<vmem>>, %arg8: memref<1x8x128xf32, #tpu.memory_space<vmem>>, %arg9: memref<1x8x128xf32, #tpu.memory_space<vmem>>, %arg10: memref<1x8x128xf32, #tpu.memory_space<vmem>>) attributes {dimension_semantics = [#tpu.dimension_semantics<parallel>, #tpu.dimension_semantics<parallel>, #tpu.dimension_semantics<arbitrary>, #tpu.dimension_semantics<arbitrary>], iteration_bounds = array<i64: 1, 1, 8, 1>, scalar_prefetch = 0 : i64, scratch_operands = 0 : i64, tpu.core_type = #tpu.core_type<tc>, window_params = [{transform_indices = @transform_0, window_bounds = array<i64: 3, 8, 24>}, {transform_indices = @transform_1, window_bounds = array<i64: 1, 24, 128>}, {transform_indices = @transform_2, window_bounds = array<i64: 1, 24, 128>}, {transform_indices = @transform_3, window_bounds = array<i64: 1, 24, 128>}, {transform_indices = @transform_4, window_bounds = array<i64: 1, 8, 128>}, {transform_indices = @transform_5, window_bounds = array<i64: 1, 8, 128>}, {transform_indices = @transform_6, window_bounds = array<i64: 1, 8, 128>}]} {
    %c0_i32 = arith.constant 0 : i32
    %0 = arith.cmpi eq, %arg2, %c0_i32 : i32
    %c0_i32_0 = arith.constant 0 : i32
    %1 = arith.cmpi eq, %arg3, %c0_i32_0 : i32
    %2 = arith.andi %0, %1 : i1
    %3 = arith.extui %2 : i1 to i32
    %c0_i32_1 = arith.constant 0 : i32
    %4 = arith.cmpi ne, %3, %c0_i32_1 : i32
    scf.if %4 {
      %cst_36 = arith.constant 0.000000e+00 : f32
      %44 = vector.broadcast %cst_36 : f32 to vector<1x8x128xf32>
      %c0_37 = arith.constant 0 : index
      %c0_38 = arith.constant 0 : index
      %c0_39 = arith.constant 0 : index
      %45 = vector.load %arg9[%c0_37, %c0_38, %c0_39] : memref<1x8x128xf32, #tpu.memory_space<vmem>>, vector<1x8x128xf32>
      tpu.vector_store %arg9[%c0_37, %c0_38, %c0_39], %44 {strides = array<i32>} : memref<1x8x128xf32, #tpu.memory_space<vmem>>, vector<1x8x128xf32>,
      %cst_40 = arith.constant 0.000000e+00 : f32
      %46 = vector.broadcast %cst_40 : f32 to vector<1x8x128xf32>
      %c0_41 = arith.constant 0 : index
      %c0_42 = arith.constant 0 : index
      %c0_43 = arith.constant 0 : index
      %47 = vector.load %arg10[%c0_41, %c0_42, %c0_43] : memref<1x8x128xf32, #tpu.memory_space<vmem>>, vector<1x8x128xf32>
      tpu.vector_store %arg10[%c0_41, %c0_42, %c0_43], %46 {strides = array<i32>} : memref<1x8x128xf32, #tpu.memory_space<vmem>>, vector<1x8x128xf32>,
    } else {
    }
    %c0 = arith.constant 0 : index
    %c0_2 = arith.constant 0 : index
    %c0_3 = arith.constant 0 : index
    %5 = vector.load %arg4[%c0, %c0_2, %c0_3] : memref<3x8x24xf32, #tpu.memory_space<vmem>>, vector<1x8x24xf32>
    %6 = vector.shape_cast %5 : vector<1x8x24xf32> to vector<8x24xf32>
    %c0_4 = arith.constant 0 : index
    %c0_5 = arith.constant 0 : index
    %c0_6 = arith.constant 0 : index
    %7 = vector.load %arg5[%c0_4, %c0_5, %c0_6] : memref<1x24x128xf32, #tpu.memory_space<vmem>>, vector<1x24x128xf32>
    %8 = vector.shape_cast %7 : vector<1x24x128xf32> to vector<24x128xf32>
    %cst = arith.constant dense<0.000000e+00> : vector<8x128xf32>
    %9 = tpu.matmul %6, %8, %cst {dimension_numbers = #tpu.dot_dimension_numbers<[1], [0], [0], [1], [0, 0, 1, 1], [], []>} : vector<8x24xf32>, vector<24x128xf32>, vector<8x128xf32> -> vector<8x128xf32>
    %c1 = arith.constant 1 : index
    %c0_7 = arith.constant 0 : index
    %c0_8 = arith.constant 0 : index
    %10 = vector.load %arg4[%c1, %c0_7, %c0_8] : memref<3x8x24xf32, #tpu.memory_space<vmem>>, vector<1x8x24xf32>
    %11 = vector.shape_cast %10 : vector<1x8x24xf32> to vector<8x24xf32>
    %c0_9 = arith.constant 0 : index
    %c0_10 = arith.constant 0 : index
    %c0_11 = arith.constant 0 : index
    %12 = vector.load %arg6[%c0_9, %c0_10, %c0_11] : memref<1x24x128xf32, #tpu.memory_space<vmem>>, vector<1x24x128xf32>
    %13 = vector.shape_cast %12 : vector<1x24x128xf32> to vector<24x128xf32>
    %cst_12 = arith.constant dense<0.000000e+00> : vector<8x128xf32>
    %14 = tpu.matmul %11, %13, %cst_12 {dimension_numbers = #tpu.dot_dimension_numbers<[1], [0], [0], [1], [0, 0, 1, 1], [], []>} : vector<8x24xf32>, vector<24x128xf32>, vector<8x128xf32> -> vector<8x128xf32>
    %15 = arith.addf %9, %14 : vector<8x128xf32>
    %c2 = arith.constant 2 : index
    %c0_13 = arith.constant 0 : index
    %c0_14 = arith.constant 0 : index
    %16 = vector.load %arg4[%c2, %c0_13, %c0_14] : memref<3x8x24xf32, #tpu.memory_space<vmem>>, vector<1x8x24xf32>
    %17 = vector.shape_cast %16 : vector<1x8x24xf32> to vector<8x24xf32>
    %c0_15 = arith.constant 0 : index
    %c0_16 = arith.constant 0 : index
    %c0_17 = arith.constant 0 : index
    %18 = vector.load %arg7[%c0_15, %c0_16, %c0_17] : memref<1x24x128xf32, #tpu.memory_space<vmem>>, vector<1x24x128xf32>
    %19 = vector.shape_cast %18 : vector<1x24x128xf32> to vector<24x128xf32>
    %cst_18 = arith.constant dense<0.000000e+00> : vector<8x128xf32>
    %20 = tpu.matmul %17, %19, %cst_18 {dimension_numbers = #tpu.dot_dimension_numbers<[1], [0], [0], [1], [0, 0, 1, 1], [], []>} : vector<8x24xf32>, vector<24x128xf32>, vector<8x128xf32> -> vector<8x128xf32>
    %21 = arith.addf %15, %20 : vector<8x128xf32>
    %c0_19 = arith.constant 0 : index
    %c0_20 = arith.constant 0 : index
    %c0_21 = arith.constant 0 : index
    %22 = vector.load %arg8[%c0_19, %c0_20, %c0_21] : memref<1x8x128xf32, #tpu.memory_space<vmem>>, vector<1x8x128xf32>
    %23 = vector.shape_cast %22 : vector<1x8x128xf32> to vector<8x128xf32>
    %24 = vector.shape_cast %21 : vector<8x128xf32> to vector<1x8x128xf32>
    tpu.vector_store %arg8[%c0_19, %c0_20, %c0_21], %24 {strides = array<i32>} : memref<1x8x128xf32, #tpu.memory_space<vmem>>, vector<1x8x128xf32>,
    %c0_22 = arith.constant 0 : index
    %c0_23 = arith.constant 0 : index
    %c0_24 = arith.constant 0 : index
    %25 = vector.load %arg9[%c0_22, %c0_23, %c0_24] : memref<1x8x128xf32, #tpu.memory_space<vmem>>, vector<1x8x128xf32>
    %26 = vector.shape_cast %25 : vector<1x8x128xf32> to vector<8x128xf32>
    %cst_25 = arith.constant dense<0.000000e+00> : vector<8xf32>
    %27 = vector.multi_reduction <add>, %21, %cst_25 [1] : vector<8x128xf32> to vector<8xf32>
    %28 = vector.shape_cast %27 : vector<8xf32> to vector<8x1xf32>
    %29 = vector.broadcast %28 : vector<8x1xf32> to vector<8x128xf32>
    %30 = arith.addf %26, %29 : vector<8x128xf32>
    %c0_26 = arith.constant 0 : index
    %c0_27 = arith.constant 0 : index
    %c0_28 = arith.constant 0 : index
    %31 = vector.load %arg9[%c0_26, %c0_27, %c0_28] : memref<1x8x128xf32, #tpu.memory_space<vmem>>, vector<1x8x128xf32>
    %32 = vector.shape_cast %31 : vector<1x8x128xf32> to vector<8x128xf32>
    %33 = vector.shape_cast %30 : vector<8x128xf32> to vector<1x8x128xf32>
    tpu.vector_store %arg9[%c0_26, %c0_27, %c0_28], %33 {strides = array<i32>} : memref<1x8x128xf32, #tpu.memory_space<vmem>>, vector<1x8x128xf32>,
    %c0_29 = arith.constant 0 : index
    %c0_30 = arith.constant 0 : index
    %c0_31 = arith.constant 0 : index
    %34 = vector.load %arg10[%c0_29, %c0_30, %c0_31] : memref<1x8x128xf32, #tpu.memory_space<vmem>>, vector<1x8x128xf32>
    %35 = vector.shape_cast %34 : vector<1x8x128xf32> to vector<8x128xf32>
    %36 = arith.mulf %21, %21 : vector<8x128xf32>
    %cst_32 = arith.constant dense<0.000000e+00> : vector<8xf32>
    %37 = vector.multi_reduction <add>, %36, %cst_32 [1] : vector<8x128xf32> to vector<8xf32>
    %38 = vector.shape_cast %37 : vector<8xf32> to vector<8x1xf32>
    %39 = vector.broadcast %38 : vector<8x1xf32> to vector<8x128xf32>
    %40 = arith.addf %35, %39 : vector<8x128xf32>
    %c0_33 = arith.constant 0 : index
    %c0_34 = arith.constant 0 : index
    %c0_35 = arith.constant 0 : index
    %41 = vector.load %arg10[%c0_33, %c0_34, %c0_35] : memref<1x8x128xf32, #tpu.memory_space<vmem>>, vector<1x8x128xf32>
    %42 = vector.shape_cast %41 : vector<1x8x128xf32> to vector<8x128xf32>
    %43 = vector.shape_cast %40 : vector<8x128xf32> to vector<1x8x128xf32>
    tpu.vector_store %arg10[%c0_33, %c0_34, %c0_35], %43 {strides = array<i32>} : memref<1x8x128xf32, #tpu.memory_space<vmem>>, vector<1x8x128xf32>,
    return
  }
  func.func @transform_0(%arg0: i32, %arg1: i32, %arg2: i32, %arg3: i32) -> (i32, i32, i32) {
    %c0_i32 = arith.constant 0 : i32
    %c0_i32_0 = arith.constant 0 : i32
    %c0_i32_1 = arith.constant 0 : i32
    return %c0_i32, %arg1, %c0_i32_0 : i32, i32, i32
  }
  func.func @transform_1(%arg0: i32, %arg1: i32, %arg2: i32, %arg3: i32) -> (i32, i32, i32) {
    %c2_i32 = arith.constant 2 : i32
    %0 = arith.muli %c2_i32, %arg2 : i32
    %c0_i32 = arith.constant 0 : i32
    %1 = arith.addi %0, %c0_i32 : i32
    %c1_i32 = arith.constant 1 : i32
    %2 = arith.muli %arg0, %c1_i32 : i32
    %3 = arith.addi %2, %arg3 : i32
    %c0_i32_0 = arith.constant 0 : i32
    %c0_i32_1 = arith.constant 0 : i32
    return %1, %c0_i32_0, %3 : i32, i32, i32
  }
  func.func @transform_2(%arg0: i32, %arg1: i32, %arg2: i32, %arg3: i32) -> (i32, i32, i32) {
    %c2_i32 = arith.constant 2 : i32
    %0 = arith.muli %c2_i32, %arg2 : i32
    %c1_i32 = arith.constant 1 : i32
    %1 = arith.addi %0, %c1_i32 : i32
    %c1_i32_0 = arith.constant 1 : i32
    %2 = arith.muli %arg0, %c1_i32_0 : i32
    %3 = arith.addi %2, %arg3 : i32
    %c0_i32 = arith.constant 0 : i32
    %c0_i32_1 = arith.constant 0 : i32
    return %1, %c0_i32, %3 : i32, i32, i32
  }
  func.func @transform_3(%arg0: i32, %arg1: i32, %arg2: i32, %arg3: i32) -> (i32, i32, i32) {
    %c2_i32 = arith.constant 2 : i32
    %0 = arith.muli %c2_i32, %arg2 : i32
    %c2_i32_0 = arith.constant 2 : i32
    %1 = arith.addi %0, %c2_i32_0 : i32
    %c1_i32 = arith.constant 1 : i32
    %2 = arith.muli %arg0, %c1_i32 : i32
    %3 = arith.addi %2, %arg3 : i32
    %c0_i32 = arith.constant 0 : i32
    %c0_i32_1 = arith.constant 0 : i32
    return %1, %c0_i32, %3 : i32, i32, i32
  }
  func.func @transform_4(%arg0: i32, %arg1: i32, %arg2: i32, %arg3: i32) -> (i32, i32, i32) {
    %c1_i32 = arith.constant 1 : i32
    %0 = arith.muli %arg0, %c1_i32 : i32
    %1 = arith.addi %0, %arg3 : i32
    %c0_i32 = arith.constant 0 : i32
    return %arg2, %arg1, %1 : i32, i32, i32
  }
  func.func @transform_5(%arg0: i32, %arg1: i32, %arg2: i32, %arg3: i32) -> (i32, i32, i32) {
    %c0_i32 = arith.constant 0 : i32
    %c0_i32_0 = arith.constant 0 : i32
    return %arg0, %arg1, %c0_i32 : i32, i32, i32
  }
  func.func @transform_6(%arg0: i32, %arg1: i32, %arg2: i32, %arg3: i32) -> (i32, i32, i32) {
    %c0_i32 = arith.constant 0 : i32
    %c0_i32_0 = arith.constant 0 : i32
    return %arg0, %arg1, %c0_i32 : i32, i32, i32
  }
}

module attributes {stable_mosaic.version = 11 : i64} {
  func.func @kernel(%arg0: i32, %arg1: i32, %arg2: i32, %arg3: memref<1x8x128xf32, #tpu.memory_space<vmem>>, %arg4: memref<2x8x128xf32, #tpu.memory_space<vmem>>, %arg5: memref<1x8x128xf32, #tpu.memory_space<vmem>>) attributes {dimension_semantics = [#tpu.dimension_semantics<parallel>, #tpu.dimension_semantics<parallel>, #tpu.dimension_semantics<parallel>], iteration_bounds = array<i64: 1, 8, 1>, scalar_prefetch = 0 : i64, scratch_operands = 0 : i64, tpu.core_type = #tpu.core_type<tc>, window_params = [{transform_indices = @transform_0, window_bounds = array<i64: 1, 8, 128>}, {transform_indices = @transform_1, window_bounds = array<i64: 2, 8, 128>}, {transform_indices = @transform_2, window_bounds = array<i64: 1, 8, 128>}]} {
    %c0 = arith.constant 0 : index
    %c0_0 = arith.constant 0 : index
    %c0_1 = arith.constant 0 : index
    %0 = vector.load %arg3[%c0, %c0_0, %c0_1] : memref<1x8x128xf32, #tpu.memory_space<vmem>>, vector<1x8x128xf32>
    %1 = vector.shape_cast %0 : vector<1x8x128xf32> to vector<8x128xf32>
    %c0_2 = arith.constant 0 : index
    %c0_3 = arith.constant 0 : index
    %c0_4 = arith.constant 0 : index
    %2 = vector.load %arg4[%c0_2, %c0_3, %c0_4] : memref<2x8x128xf32, #tpu.memory_space<vmem>>, vector<1x8x1xf32>
    %3 = vector.shape_cast %2 : vector<1x8x1xf32> to vector<8x1xf32>
    %c1 = arith.constant 1 : index
    %c0_5 = arith.constant 0 : index
    %c0_6 = arith.constant 0 : index
    %4 = vector.load %arg4[%c1, %c0_5, %c0_6] : memref<2x8x128xf32, #tpu.memory_space<vmem>>, vector<1x8x1xf32>
    %5 = vector.shape_cast %4 : vector<1x8x1xf32> to vector<8x1xf32>
    %6 = vector.broadcast %3 : vector<8x1xf32> to vector<8x128xf32>
    %7 = arith.mulf %1, %6 : vector<8x128xf32>
    %8 = vector.broadcast %5 : vector<8x1xf32> to vector<8x128xf32>
    %9 = arith.addf %7, %8 : vector<8x128xf32>
    %cst = arith.constant 0.000000e+00 : f32
    %10 = vector.broadcast %cst : f32 to vector<8x128xf32>
    %11 = arith.cmpf ogt, %9, %10 : vector<8x128xf32>
    %cst_7 = arith.constant 0.00999999977 : f32
    %12 = vector.broadcast %cst_7 : f32 to vector<8x128xf32>
    %13 = arith.mulf %12, %9 : vector<8x128xf32>
    %14 = arith.select %11, %9, %13 : vector<8x128xi1>, vector<8x128xf32>
    %c0_8 = arith.constant 0 : index
    %c0_9 = arith.constant 0 : index
    %c0_10 = arith.constant 0 : index
    %15 = vector.load %arg5[%c0_8, %c0_9, %c0_10] : memref<1x8x128xf32, #tpu.memory_space<vmem>>, vector<1x8x128xf32>
    %16 = vector.shape_cast %15 : vector<1x8x128xf32> to vector<8x128xf32>
    %17 = vector.shape_cast %14 : vector<8x128xf32> to vector<1x8x128xf32>
    tpu.vector_store %arg5[%c0_8, %c0_9, %c0_10], %17 {strides = array<i32>} : memref<1x8x128xf32, #tpu.memory_space<vmem>>, vector<1x8x128xf32>,
    return
  }
  func.func @transform_0(%arg0: i32, %arg1: i32, %arg2: i32) -> (i32, i32, i32) {
    %c0_i32 = arith.constant 0 : i32
    return %arg1, %arg0, %arg2 : i32, i32, i32
  }
  func.func @transform_1(%arg0: i32, %arg1: i32, %arg2: i32) -> (i32, i32, i32) {
    %c0_i32 = arith.constant 0 : i32
    %c0_i32_0 = arith.constant 0 : i32
    %c0_i32_1 = arith.constant 0 : i32
    return %c0_i32, %arg0, %c0_i32_0 : i32, i32, i32
  }
  func.func @transform_2(%arg0: i32, %arg1: i32, %arg2: i32) -> (i32, i32, i32) {
    %c0_i32 = arith.constant 0 : i32
    return %arg1, %arg0, %arg2 : i32, i32, i32
  }
}

</mosaic_0001>

<llo_original>
// kernel: downsampling_forward.3
$region0: #{downsampling_forward.3}
  #allocation0 [shape = 'u32[]', space=smem, size = 0x4, offset = 0x4, fixed_abs, tag = 'smem constant byte address 0x4 - core index']
  #allocation1 [shape = 'u32[144,128]{1,0:T(1,128)}', space=vmem, size = 0x12000, scoped, tag = 'internal scratch']
  %s0 = inlined_call_operand.vmem [shape: f32[8,8,128], index: 0, kind: input, shape index: {}]
  %s1 = inlined_call_operand.vmem [shape: f32[2,8,128], index: 1, kind: input, shape index: {}]
  %s2 = inlined_call_operand.vmem [shape: f32[8,8,128], index: 2, kind: output, shape index: {}]
  %s3 = sld [smem:[#allocation0]]
  $region41: #{downsampling_forward.3} parent=0
    _
  %s5 = ssub.s32 1, %s3
  %s6 = scalar_select 0, %s5, %s3
  loop: start=0, step=1, limit=10
  $region2: #{downsampling_forward.3} parent=0 // loop_pre_header
    _
  $region3: #{downsampling_forward.3} parent=0 // loop_header
    %s8 = sphi 0, %s12
    %p9 = scmp.ge.s32.totalorder %s8, 10
    %s15 = sphi 0, %s34
    %s16 = sphi 0, %s30
    %s17 = sphi 0, %s26
    %s18 = sphi 0, %s15
    %s19 = sphi 0, %s16
    %s20 = sphi 0, %s17
    %s21 = sphi 0, %s18
    %s22 = sphi 0, %s19
    %s23 = sphi 0, %s20
    %s41 = sphi 0, %s43
    %s44 = sphi 0, %s41
    %s45 = sphi 0, %s44
    %s61 = sphi 0, %s45
    %s67 = sphi 0, %s69
    %s70 = sphi 0, %s67
    %s71 = sphi 0, %s70
    %s87 = sphi 0, %s71
    %s97 = sphi 0, %s99
    %s100 = sphi 0, %s97
    %s101 = sphi 0, %s100
    %s117 = sphi 0, %s101
  $region4: #{downsampling_forward.3} parent=0 // loop_header_branch
    %11 = sbr.rel (%p9) target = $region8
  $region5: #{downsampling_forward.3} parent=0 // loop_body
    %s13 = ssub.s32 %s8, 1
    %s14 = ssub.s32 %s8, 2
    %s24 = sadd.s32 1, %s17
    %p25 = scmp.ge.s32.totalorder %s24, 1
    %s26 = scalar_select %p25, 0, %s24
    %s27 = sadd.s32 1, %s16
    %s28 = scalar_select %p25, %s27, %s16
    %p29 = scmp.ge.s32.totalorder %s28, 8
    %s30 = scalar_select %p29, 0, %s28
    %s31 = sadd.s32 1, %s15
    %s32 = scalar_select %p29, %s31, %s15
    %p33 = scmp.ge.s32.totalorder %s32, 1
    %s34 = scalar_select %p33, 0, %s32
    %s35 = ssub.s32 %s16, %s30
    %s36 = ssub.s32 %s15, %s34
    %s37 = sor.u32 %s35, %s36
    %s38 = ssub.s32 %s17, %s26
    %s39 = sor.u32 %s37, %s38
    %p40 = scmp.eq.s32.totalorder %s39, 0
    %s42 = sadd.s32 %s41, 1
    %s43 = scalar_select %p40, %s41, %s42
    %p46 = pneg %p40
    %p47 = scmp.eq.s32.totalorder %s8, 7
    %p48 = por %p46, %p47
    %p49 = scmp.ne.s32.totalorder %s41, %s44
    %p50 = scmp.eq.s32.totalorder %s8, 0
    %p51 = por %p49, %p50
    %p52 = scmp.ne.s32.totalorder %s41, %s44
    %p53 = scmp.eq.s32.totalorder %s13, 7
    %p54 = por %p52, %p53
    %p55 = scmp.ne.s32.totalorder %s44, %s45
    %p56 = scmp.eq.s32.totalorder %s13, 0
    %p57 = por %p55, %p56
    %p58 = scmp.ne.s32.totalorder %s44, %s45
    %p59 = scmp.eq.s32.totalorder %s14, 7
    %p60 = por %p58, %p59
    %p62 = scmp.ne.s32.totalorder %s45, %s61
    %p63 = scmp.eq.s32.totalorder %s14, 0
    %p64 = por %p62, %p63
    %s65 = ssub.s32 %s15, %s34
    %p66 = scmp.eq.s32.totalorder %s65, 0
    %s68 = sadd.s32 %s67, 1
    %s69 = scalar_select %p66, %s67, %s68
    %p72 = pneg %p66
    %p73 = scmp.eq.s32.totalorder %s8, 7
    %p74 = por %p72, %p73
    %p75 = scmp.ne.s32.totalorder %s67, %s70
    %p76 = scmp.eq.s32.totalorder %s8, 0
    %p77 = por %p75, %p76
    %p78 = scmp.ne.s32.totalorder %s67, %s70
    %p79 = scmp.eq.s32.totalorder %s13, 7
    %p80 = por %p78, %p79
    %p81 = scmp.ne.s32.totalorder %s70, %s71
    %p82 = scmp.eq.s32.totalorder %s13, 0
    %p83 = por %p81, %p82
    %p84 = scmp.ne.s32.totalorder %s70, %s71
    %p85 = scmp.eq.s32.totalorder %s14, 7
    %p86 = por %p84, %p85
    %p88 = scmp.ne.s32.totalorder %s71, %s87
    %p89 = scmp.eq.s32.totalorder %s14, 0
    %p90 = por %p88, %p89
    %s91 = ssub.s32 %s16, %s30
    %s92 = ssub.s32 %s15, %s34
    %s93 = sor.u32 %s91, %s92
    %s94 = ssub.s32 %s17, %s26
    %s95 = sor.u32 %s93, %s94
    %p96 = scmp.eq.s32.totalorder %s95, 0
    %s98 = sadd.s32 %s97, 1
    %s99 = scalar_select %p96, %s97, %s98
    %p102 = pneg %p96
    %p103 = scmp.eq.s32.totalorder %s8, 7
    %p104 = por %p102, %p103
    %p105 = scmp.ne.s32.totalorder %s97, %s100
    %p106 = scmp.eq.s32.totalorder %s8, 0
    %p107 = por %p105, %p106
    %p108 = scmp.ne.s32.totalorder %s97, %s100
    %p109 = scmp.eq.s32.totalorder %s13, 7
    %p110 = por %p108, %p109
    %p111 = scmp.ne.s32.totalorder %s100, %s101
    %p112 = scmp.eq.s32.totalorder %s13, 0
    %p113 = por %p111, %p112
    %p114 = scmp.ne.s32.totalorder %s100, %s101
    %p115 = scmp.eq.s32.totalorder %s14, 7
    %p116 = por %p114, %p115
    %p118 = scmp.ne.s32.totalorder %s101, %s117
    %p119 = scmp.eq.s32.totalorder %s14, 0
    %p120 = por %p118, %p119
    %p121 = scmp.le.s32.totalorder 1, %s8
    %p122 = scmp.lt.s32.totalorder %s8, 9
    %p123 = pnand %p121, %p122
    %p124 = pneg %p123
    // Predicated region
    $region9: #{downsampling_forward.3} parent=5 // pred_check
      _
    $region10: #{downsampling_forward.3} parent=5 // pred_check_branch
      %126 = sbr.rel (%p123) target = $region12
    $region11: #{downsampling_forward.3} parent=5 // pred_region
      %s127 = ssub.s32 %s8, 1
      // Predicated region
      $region13: #{downsampling_forward.3} parent=11 // pred_check
        %p128 = pneg %p83
      $region14: #{downsampling_forward.3} parent=11 // pred_check_branch
        %130 = sbr.rel (%p128) target = $region16
      $region15: #{downsampling_forward.3} parent=11 // pred_region
        %p131 = scmp.lt.s32.totalorder %s18, 0
        %s132 = scalar_select %p131, %s18, 0
        %s133 = smul.addr %s132, 8
        %s134 = scalar_lea.vmem %s1, %s133
      $region16: #{downsampling_forward.3} parent=11 // pred_fallthru
        _
    $region12: #{downsampling_forward.3} parent=5 // pred_fallthru
      _
    %p135 = scmp.lt.s32.totalorder %s8, 8
    // Predicated region
    $region17: #{downsampling_forward.3} parent=5 // pred_check
      %p136 = pneg %p135
    $region18: #{downsampling_forward.3} parent=5 // pred_check_branch
      %138 = sbr.rel (%p136) target = $region20
    $region19: #{downsampling_forward.3} parent=5 // pred_region
      // Predicated region
      $region21: #{downsampling_forward.3} parent=19 // pred_check
        %p139 = pneg %p51
      $region22: #{downsampling_forward.3} parent=19 // pred_check_branch
        %141 = sbr.rel (%p139) target = $region24
      $region23: #{downsampling_forward.3} parent=19 // pred_region
        %p142 = scmp.lt.s32.totalorder %s16, 7
        %s143 = scalar_select %p142, %s16, 7
        %p144 = scmp.lt.s32.totalorder %s15, 0
        %s145 = scalar_select %p144, %s15, 0
        %p146 = scmp.lt.s32.totalorder %s17, 0
        %s147 = scalar_select %p146, %s17, 0
        %s148 = sadd.s32 %s147, %s145
        %s149 = sadd.s32 %s148, %s143
        %s150 = smul.addr %s149, 8
        %s151 = scalar_lea.vmem %s0, %s150
      $region24: #{downsampling_forward.3} parent=19 // pred_fallthru
        _
    $region20: #{downsampling_forward.3} parent=5 // pred_fallthru
      _
    %p152 = scmp.le.s32.totalorder 1, %s8
    %p153 = scmp.lt.s32.totalorder %s8, 9
    %p154 = pnand %p152, %p153
    %p155 = pneg %p154
    // Predicated region
    $region25: #{downsampling_forward.3} parent=5 // pred_check
      _
    $region26: #{downsampling_forward.3} parent=5 // pred_check_branch
      %157 = sbr.rel (%p154) target = $region28
    $region27: #{downsampling_forward.3} parent=5 // pred_region
      %s158 = ssub.s32 %s8, 1
      %p159 = scmp.lt.s32.totalorder %s19, 7
      %s160 = scalar_select %p159, %s19, 7
      %p161 = scmp.lt.s32.totalorder %s18, 0
      %s162 = scalar_select %p161, %s18, 0
      %p163 = scmp.lt.s32.totalorder %s20, 0
      %s164 = scalar_select %p163, %s20, 0
      %s165 = sadd.s32 %s164, %s162
      %s166 = sadd.s32 %s165, %s160
      %s167 = smul.addr %s166, 8
      %s168 = scalar_lea.vmem %s0, %s167
      %p169 = pneg %p57
      %p170 = pneg %p54
      %p171 = scmp.lt.s32.totalorder %s18, 0
      %s172 = scalar_select %p171, %s18, 0
      %s173 = smul.addr %s172, 8
      %s174 = scalar_lea.vmem %s1, %s173
      %p175 = pneg %p83
      %p176 = pneg %p80
      %p177 = pneg %p113
      %p178 = pneg %p110
      %p179 = scmp.lt.s32.totalorder %s19, 7
      %s180 = scalar_select %p179, %s19, 7
      %p181 = scmp.lt.s32.totalorder %s18, 0
      %s182 = scalar_select %p181, %s18, 0
      %p183 = scmp.lt.s32.totalorder %s20, 0
      %s184 = scalar_select %p183, %s20, 0
      %s185 = sadd.s32 %s184, %s182
      %s186 = sadd.s32 %s185, %s180
      %s187 = smul.addr %s186, 8
      %s188 = scalar_lea.vmem %s2, %s187
      %p189 = scmp.lt.s32.totalorder %s19, 7
      %s190 = scalar_select %p189, %s19, 7
      %p191 = scmp.lt.s32.totalorder %s18, 0
      %s192 = scalar_select %p191, %s18, 0
      %p193 = scmp.lt.s32.totalorder %s20, 0
      %s194 = scalar_select %p193, %s20, 0
      %s195 = sadd.s32 %s194, %s192
      %s196 = sadd.s32 %s195, %s190
      %s197 = smul.addr %s196, 8
      %s198 = scalar_lea.vmem %s0, %s197
      %p199 = scmp.lt.s32.totalorder %s18, 0
      %s200 = scalar_select %p199, %s18, 0
      %s201 = smul.addr %s200, 8
      %s202 = scalar_lea.vmem %s1, %s201
      %p203 = scmp.lt.s32.totalorder %s19, 7
      %s204 = scalar_select %p203, %s19, 7
      %p205 = scmp.lt.s32.totalorder %s18, 0
      %s206 = scalar_select %p205, %s18, 0
      %p207 = scmp.lt.s32.totalorder %s20, 0
      %s208 = scalar_select %p207, %s20, 0
      %s209 = sadd.s32 %s208, %s206
      %s210 = sadd.s32 %s209, %s204
      %s211 = smul.addr %s210, 8
      %s212 = scalar_lea.vmem %s2, %s211
      %v213 = vld [vmem:[%s198] sm:$0xff]
      %v214 = vld [vmem:[%s202] sm:$0xff]
      %s215 = scalar_lea.vmem %s202, 8
      %v216 = vld [vmem:[%s215] sm:$0xff]
      %218 = vset.pattern.permute.xlu0 0
      %219 = vperm.xlu0 %218, %v214
      %v220 = vpop.permute.xlu0 %219
      %v222 = vmul.f32 %v213, %v220
      %224 = vset.pattern.permute.xlu0 0
      %225 = vperm.xlu0 %224, %v216
      %v226 = vpop.permute.xlu0 %225
      %v228 = vadd.f32 %v222, %v226
      %vm229 = vcmp.gt.f32.partialorder %v228, 0.0
      %v230 = vmul.f32 %v228, 0.01
      %v231 = vsel %vm229, %v228, %v230
      %232 = vst [vmem:[%s212] sm:$0xff] %v231
      %p233 = scmp.lt.s32.totalorder %s19, 7
      %s234 = scalar_select %p233, %s19, 7
      %p235 = scmp.lt.s32.totalorder %s18, 0
      %s236 = scalar_select %p235, %s18, 0
      %p237 = scmp.lt.s32.totalorder %s20, 0
      %s238 = scalar_select %p237, %s20, 0
      %s239 = sadd.s32 %s238, %s236
      %s240 = sadd.s32 %s239, %s234
      %s241 = smul.addr %s240, 8
      %s242 = scalar_lea.vmem %s2, %s241
      // Predicated region
      $region29: #{downsampling_forward.3} parent=27 // pred_check
        %p243 = pneg %p110
      $region30: #{downsampling_forward.3} parent=27 // pred_check_branch
        %245 = sbr.rel (%p243) target = $region32
      $region31: #{downsampling_forward.3} parent=27 // pred_region
        _
      $region32: #{downsampling_forward.3} parent=27 // pred_fallthru
        _
    $region28: #{downsampling_forward.3} parent=5 // pred_fallthru
      _
    %p246 = scmp.le.s32.totalorder 2, %s8
    // Predicated region
    $region33: #{downsampling_forward.3} parent=5 // pred_check
      %p247 = pneg %p246
    $region34: #{downsampling_forward.3} parent=5 // pred_check_branch
      %249 = sbr.rel (%p247) target = $region36
    $region35: #{downsampling_forward.3} parent=5 // pred_region
      %s250 = ssub.s32 %s8, 2
      // Predicated region
      $region37: #{downsampling_forward.3} parent=35 // pred_check
        %p251 = pneg %p116
      $region38: #{downsampling_forward.3} parent=35 // pred_check_branch
        %253 = sbr.rel (%p251) target = $region40
      $region39: #{downsampling_forward.3} parent=35 // pred_region
        %p254 = scmp.lt.s32.totalorder %s22, 7
        %s255 = scalar_select %p254, %s22, 7
        %p256 = scmp.lt.s32.totalorder %s21, 0
        %s257 = scalar_select %p256, %s21, 0
        %p258 = scmp.lt.s32.totalorder %s23, 0
        %s259 = scalar_select %p258, %s23, 0
        %s260 = sadd.s32 %s259, %s257
        %s261 = sadd.s32 %s260, %s255
        %s262 = smul.addr %s261, 8
        %s263 = scalar_lea.vmem %s2, %s262
      $region40: #{downsampling_forward.3} parent=35 // pred_fallthru
        _
    $region36: #{downsampling_forward.3} parent=5 // pred_fallthru
      _
  $region6: #{downsampling_forward.3} parent=0 // loop_footer
    %s12 = sadd.s32 1, %s8
  $region7: #{downsampling_forward.3} parent=0 // loop_footer_branch
    %7 = sbr.rel target = $region3
  $region8: #{downsampling_forward.3} parent=0 // loop_exit
    _

// kernel: downsampling_forward.2
$region0: #{downsampling_forward.2}
  #allocation0 [shape = 'u32[]', space=smem, size = 0x4, offset = 0x4, fixed_abs, tag = 'smem constant byte address 0x4 - core index']
  #allocation1 [shape = 'u32[144,128]{1,0:T(1,128)}', space=vmem, size = 0x12000, scoped, tag = 'internal scratch']
  %s0 = inlined_call_operand.vmem [shape: f32[3,8,24], index: 0, kind: input, shape index: {}]
  %s1 = inlined_call_operand.vmem [shape: f32[18,24,128], index: 1, kind: input, shape index: {}, may-alias: {1,2,3}]
  %s2 = inlined_call_operand.vmem [shape: f32[18,24,128], index: 2, kind: input, shape index: {}, may-alias: {1,2,3}]
  %s3 = inlined_call_operand.vmem [shape: f32[18,24,128], index: 3, kind: input, shape index: {}, may-alias: {1,2,3}]
  %s4 = inlined_call_operand.vmem [shape: f32[8,8,128], index: 4, kind: output, shape index: {0}]
  %s5 = inlined_call_operand.vmem [shape: f32[1,8,128], index: 5, kind: output, shape index: {1}]
  %s6 = inlined_call_operand.vmem [shape: f32[1,8,128], index: 6, kind: output, shape index: {2}]
  %7 = xla_tuple %s4, %s5, %s6
  %s8 = sld [smem:[#allocation0]]
  $region69: #{downsampling_forward.2} parent=0
    _
  %s10 = ssub.s32 1, %s8
  %s11 = scalar_select 0, %s10, %s8
  loop: start=0, step=1, limit=10
  $region2: #{downsampling_forward.2} parent=0 // loop_pre_header
    _
  $region3: #{downsampling_forward.2} parent=0 // loop_header
    %s13 = sphi 0, %s17
    %p14 = scmp.ge.s32.totalorder %s13, 10
    %s20 = sphi 0, %s46
    %s21 = sphi 0, %s42
    %s22 = sphi 0, %s38
    %s23 = sphi 0, %s34
    %s24 = sphi 0, %s20
    %s25 = sphi 0, %s21
    %s26 = sphi 0, %s22
    %s27 = sphi 0, %s23
    %s28 = sphi 0, %s24
    %s29 = sphi 0, %s25
    %s30 = sphi 0, %s26
    %s31 = sphi 0, %s27
    %s49 = sphi 0, %s51
    %s52 = sphi 0, %s49
    %s53 = sphi 0, %s52
    %s69 = sphi 0, %s53
    %s81 = sphi 0, %s83
    %s84 = sphi 0, %s81
    %s85 = sphi 0, %s84
    %s101 = sphi 0, %s85
    %s115 = sphi 0, %s117
    %s118 = sphi 0, %s115
    %s119 = sphi 0, %s118
    %s135 = sphi 0, %s119
    %s149 = sphi 0, %s151
    %s152 = sphi 0, %s149
    %s153 = sphi 0, %s152
    %s169 = sphi 0, %s153
    %s181 = sphi 0, %s183
    %s184 = sphi 0, %s181
    %s185 = sphi 0, %s184
    %s201 = sphi 0, %s185
    %s209 = sphi 0, %s211
    %s212 = sphi 0, %s209
    %s213 = sphi 0, %s212
    %s229 = sphi 0, %s213
    %s237 = sphi 0, %s239
    %s240 = sphi 0, %s237
    %s241 = sphi 0, %s240
    %s257 = sphi 0, %s241
  $region4: #{downsampling_forward.2} parent=0 // loop_header_branch
    %16 = sbr.rel (%p14) target = $region8
  $region5: #{downsampling_forward.2} parent=0 // loop_body
    %s18 = ssub.s32 %s13, 1
    %s19 = ssub.s32 %s13, 2
    %s32 = sadd.s32 1, %s23
    %p33 = scmp.ge.s32.totalorder %s32, 1
    %s34 = scalar_select %p33, 0, %s32
    %s35 = sadd.s32 1, %s22
    %s36 = scalar_select %p33, %s35, %s22
    %p37 = scmp.ge.s32.totalorder %s36, 8
    %s38 = scalar_select %p37, 0, %s36
    %s39 = sadd.s32 1, %s21
    %s40 = scalar_select %p37, %s39, %s21
    %p41 = scmp.ge.s32.totalorder %s40, 1
    %s42 = scalar_select %p41, 0, %s40
    %s43 = sadd.s32 1, %s20
    %s44 = scalar_select %p41, %s43, %s20
    %p45 = scmp.ge.s32.totalorder %s44, 1
    %s46 = scalar_select %p45, 0, %s44
    %s47 = ssub.s32 %s21, %s42
    %p48 = scmp.eq.s32.totalorder %s47, 0
    %s50 = sadd.s32 %s49, 1
    %s51 = scalar_select %p48, %s49, %s50
    %p54 = pneg %p48
    %p55 = scmp.eq.s32.totalorder %s13, 7
    %p56 = por %p54, %p55
    %p57 = scmp.ne.s32.totalorder %s49, %s52
    %p58 = scmp.eq.s32.totalorder %s13, 0
    %p59 = por %p57, %p58
    %p60 = scmp.ne.s32.totalorder %s49, %s52
    %p61 = scmp.eq.s32.totalorder %s18, 7
    %p62 = por %p60, %p61
    %p63 = scmp.ne.s32.totalorder %s52, %s53
    %p64 = scmp.eq.s32.totalorder %s18, 0
    %p65 = por %p63, %p64
    %p66 = scmp.ne.s32.totalorder %s52, %s53
    %p67 = scmp.eq.s32.totalorder %s19, 7
    %p68 = por %p66, %p67
    %p70 = scmp.ne.s32.totalorder %s53, %s69
    %p71 = scmp.eq.s32.totalorder %s19, 0
    %p72 = por %p70, %p71
    %s73 = smul.u32 %s22, 2
    %s74 = sadd.s32 %s20, %s23
    %s75 = smul.u32 %s38, 2
    %s76 = sadd.s32 %s46, %s34
    %s77 = ssub.s32 %s73, %s75
    %s78 = ssub.s32 %s74, %s76
    %s79 = sor.u32 %s77, %s78
    %p80 = scmp.eq.s32.totalorder %s79, 0
    %s82 = sadd.s32 %s81, 1
    %s83 = scalar_select %p80, %s81, %s82
    %p86 = pneg %p80
    %p87 = scmp.eq.s32.totalorder %s13, 7
    %p88 = por %p86, %p87
    %p89 = scmp.ne.s32.totalorder %s81, %s84
    %p90 = scmp.eq.s32.totalorder %s13, 0
    %p91 = por %p89, %p90
    %p92 = scmp.ne.s32.totalorder %s81, %s84
    %p93 = scmp.eq.s32.totalorder %s18, 7
    %p94 = por %p92, %p93
    %p95 = scmp.ne.s32.totalorder %s84, %s85
    %p96 = scmp.eq.s32.totalorder %s18, 0
    %p97 = por %p95, %p96
    %p98 = scmp.ne.s32.totalorder %s84, %s85
    %p99 = scmp.eq.s32.totalorder %s19, 7
    %p100 = por %p98, %p99
    %p102 = scmp.ne.s32.totalorder %s85, %s101
    %p103 = scmp.eq.s32.totalorder %s19, 0
    %p104 = por %p102, %p103
    %s105 = smul.u32 %s22, 2
    %s106 = sadd.s32 %s105, 1
    %s107 = sadd.s32 %s20, %s23
    %s108 = smul.u32 %s38, 2
    %s109 = sadd.s32 %s108, 1
    %s110 = sadd.s32 %s46, %s34
    %s111 = ssub.s32 %s106, %s109
    %s112 = ssub.s32 %s107, %s110
    %s113 = sor.u32 %s111, %s112
    %p114 = scmp.eq.s32.totalorder %s113, 0
    %s116 = sadd.s32 %s115, 1
    %s117 = scalar_select %p114, %s115, %s116
    %p120 = pneg %p114
    %p121 = scmp.eq.s32.totalorder %s13, 7
    %p122 = por %p120, %p121
    %p123 = scmp.ne.s32.totalorder %s115, %s118
    %p124 = scmp.eq.s32.totalorder %s13, 0
    %p125 = por %p123, %p124
    %p126 = scmp.ne.s32.totalorder %s115, %s118
    %p127 = scmp.eq.s32.totalorder %s18, 7
    %p128 = por %p126, %p127
    %p129 = scmp.ne.s32.totalorder %s118, %s119
    %p130 = scmp.eq.s32.totalorder %s18, 0
    %p131 = por %p129, %p130
    %p132 = scmp.ne.s32.totalorder %s118, %s119
    %p133 = scmp.eq.s32.totalorder %s19, 7
    %p134 = por %p132, %p133
    %p136 = scmp.ne.s32.totalorder %s119, %s135
    %p137 = scmp.eq.s32.totalorder %s19, 0
    %p138 = por %p136, %p137
    %s139 = smul.u32 %s22, 2
    %s140 = sadd.s32 %s139, 2
    %s141 = sadd.s32 %s20, %s23
    %s142 = smul.u32 %s38, 2
    %s143 = sadd.s32 %s142, 2
    %s144 = sadd.s32 %s46, %s34
    %s145 = ssub.s32 %s140, %s143
    %s146 = ssub.s32 %s141, %s144
    %s147 = sor.u32 %s145, %s146
    %p148 = scmp.eq.s32.totalorder %s147, 0
    %s150 = sadd.s32 %s149, 1
    %s151 = scalar_select %p148, %s149, %s150
    %p154 = pneg %p148
    %p155 = scmp.eq.s32.totalorder %s13, 7
    %p156 = por %p154, %p155
    %p157 = scmp.ne.s32.totalorder %s149, %s152
    %p158 = scmp.eq.s32.totalorder %s13, 0
    %p159 = por %p157, %p158
    %p160 = scmp.ne.s32.totalorder %s149, %s152
    %p161 = scmp.eq.s32.totalorder %s18, 7
    %p162 = por %p160, %p161
    %p163 = scmp.ne.s32.totalorder %s152, %s153
    %p164 = scmp.eq.s32.totalorder %s18, 0
    %p165 = por %p163, %p164
    %p166 = scmp.ne.s32.totalorder %s152, %s153
    %p167 = scmp.eq.s32.totalorder %s19, 7
    %p168 = por %p166, %p167
    %p170 = scmp.ne.s32.totalorder %s153, %s169
    %p171 = scmp.eq.s32.totalorder %s19, 0
    %p172 = por %p170, %p171
    %s173 = sadd.s32 %s20, %s23
    %s174 = sadd.s32 %s46, %s34
    %s175 = ssub.s32 %s22, %s38
    %s176 = ssub.s32 %s21, %s42
    %s177 = sor.u32 %s175, %s176
    %s178 = ssub.s32 %s173, %s174
    %s179 = sor.u32 %s177, %s178
    %p180 = scmp.eq.s32.totalorder %s179, 0
    %s182 = sadd.s32 %s181, 1
    %s183 = scalar_select %p180, %s181, %s182
    %p186 = pneg %p180
    %p187 = scmp.eq.s32.totalorder %s13, 7
    %p188 = por %p186, %p187
    %p189 = scmp.ne.s32.totalorder %s181, %s184
    %p190 = scmp.eq.s32.totalorder %s13, 0
    %p191 = por %p189, %p190
    %p192 = scmp.ne.s32.totalorder %s181, %s184
    %p193 = scmp.eq.s32.totalorder %s18, 7
    %p194 = por %p192, %p193
    %p195 = scmp.ne.s32.totalorder %s184, %s185
    %p196 = scmp.eq.s32.totalorder %s18, 0
    %p197 = por %p195, %p196
    %p198 = scmp.ne.s32.totalorder %s184, %s185
    %p199 = scmp.eq.s32.totalorder %s19, 7
    %p200 = por %p198, %p199
    %p202 = scmp.ne.s32.totalorder %s185, %s201
    %p203 = scmp.eq.s32.totalorder %s19, 0
    %p204 = por %p202, %p203
    %s205 = ssub.s32 %s20, %s46
    %s206 = ssub.s32 %s21, %s42
    %s207 = sor.u32 %s205, %s206
    %p208 = scmp.eq.s32.totalorder %s207, 0
    %s210 = sadd.s32 %s209, 1
    %s211 = scalar_select %p208, %s209, %s210
    %p214 = pneg %p208
    %p215 = scmp.eq.s32.totalorder %s13, 7
    %p216 = por %p214, %p215
    %p217 = scmp.ne.s32.totalorder %s209, %s212
    %p218 = scmp.eq.s32.totalorder %s13, 0
    %p219 = por %p217, %p218
    %p220 = scmp.ne.s32.totalorder %s209, %s212
    %p221 = scmp.eq.s32.totalorder %s18, 7
    %p222 = por %p220, %p221
    %p223 = scmp.ne.s32.totalorder %s212, %s213
    %p224 = scmp.eq.s32.totalorder %s18, 0
    %p225 = por %p223, %p224
    %p226 = scmp.ne.s32.totalorder %s212, %s213
    %p227 = scmp.eq.s32.totalorder %s19, 7
    %p228 = por %p226, %p227
    %p230 = scmp.ne.s32.totalorder %s213, %s229
    %p231 = scmp.eq.s32.totalorder %s19, 0
    %p232 = por %p230, %p231
    %s233 = ssub.s32 %s20, %s46
    %s234 = ssub.s32 %s21, %s42
    %s235 = sor.u32 %s233, %s234
    %p236 = scmp.eq.s32.totalorder %s235, 0
    %s238 = sadd.s32 %s237, 1
    %s239 = scalar_select %p236, %s237, %s238
    %p242 = pneg %p236
    %p243 = scmp.eq.s32.totalorder %s13, 7
    %p244 = por %p242, %p243
    %p245 = scmp.ne.s32.totalorder %s237, %s240
    %p246 = scmp.eq.s32.totalorder %s13, 0
    %p247 = por %p245, %p246
    %p248 = scmp.ne.s32.totalorder %s237, %s240
    %p249 = scmp.eq.s32.totalorder %s18, 7
    %p250 = por %p248, %p249
    %p251 = scmp.ne.s32.totalorder %s240, %s241
    %p252 = scmp.eq.s32.totalorder %s18, 0
    %p253 = por %p251, %p252
    %p254 = scmp.ne.s32.totalorder %s240, %s241
    %p255 = scmp.eq.s32.totalorder %s19, 7
    %p256 = por %p254, %p255
    %p258 = scmp.ne.s32.totalorder %s241, %s257
    %p259 = scmp.eq.s32.totalorder %s19, 0
    %p260 = por %p258, %p259
    %p261 = scmp.le.s32.totalorder 1, %s13
    %p262 = scmp.lt.s32.totalorder %s13, 9
    %p263 = pnand %p261, %p262
    %p264 = pneg %p263
    // Predicated region
    $region9: #{downsampling_forward.2} parent=5 // pred_check
      _
    $region10: #{downsampling_forward.2} parent=5 // pred_check_branch
      %266 = sbr.rel (%p263) target = $region12
    $region11: #{downsampling_forward.2} parent=5 // pred_region
      %s267 = ssub.s32 %s13, 1
      // Predicated region
      $region13: #{downsampling_forward.2} parent=11 // pred_check
        %p268 = pneg %p65
      $region14: #{downsampling_forward.2} parent=11 // pred_check_branch
        %270 = sbr.rel (%p268) target = $region16
      $region15: #{downsampling_forward.2} parent=11 // pred_region
        %p271 = scmp.lt.s32.totalorder %s25, 0
        %s272 = scalar_select %p271, %s25, 0
        %s273 = smul.addr %s272, 8
        %s274 = scalar_lea.vmem %s0, %s273
      $region16: #{downsampling_forward.2} parent=11 // pred_fallthru
        _
    $region12: #{downsampling_forward.2} parent=5 // pred_fallthru
      _
    %p275 = scmp.lt.s32.totalorder %s13, 8
    // Predicated region
    $region17: #{downsampling_forward.2} parent=5 // pred_check
      %p276 = pneg %p275
    $region18: #{downsampling_forward.2} parent=5 // pred_check_branch
      %278 = sbr.rel (%p276) target = $region20
    $region19: #{downsampling_forward.2} parent=5 // pred_region
      // Predicated region
      $region21: #{downsampling_forward.2} parent=19 // pred_check
        %p279 = pneg %p91
      $region22: #{downsampling_forward.2} parent=19 // pred_check_branch
        %281 = sbr.rel (%p279) target = $region24
      $region23: #{downsampling_forward.2} parent=19 // pred_region
        %s282 = smul.u32 %s22, 2
        %s283 = sadd.s32 %s20, %s23
        %p284 = scmp.lt.s32.totalorder %s282, 17
        %s285 = scalar_select %p284, %s282, 17
        %p286 = scmp.lt.s32.totalorder %s283, 0
        %s287 = scalar_select %p286, %s283, 0
        %s288 = smul.addr %s285, 3
        %s289 = sadd.s32 %s287, %s288
        %s290 = smul.addr %s289, 8
        %s291 = scalar_lea.vmem %s1, %s290
        %s292 = smul.u32 %s22, 2
        %s293 = sadd.s32 %s20, %s23
      $region24: #{downsampling_forward.2} parent=19 // pred_fallthru
        _
      // Predicated region
      $region25: #{downsampling_forward.2} parent=19 // pred_check
        %p294 = pneg %p125
      $region26: #{downsampling_forward.2} parent=19 // pred_check_branch
        %296 = sbr.rel (%p294) target = $region28
      $region27: #{downsampling_forward.2} parent=19 // pred_region
        %s297 = smul.u32 %s22, 2
        %s298 = sadd.s32 %s297, 1
        %s299 = sadd.s32 %s20, %s23
        %p300 = scmp.lt.s32.totalorder %s298, 17
        %s301 = scalar_select %p300, %s298, 17
        %p302 = scmp.lt.s32.totalorder %s299, 0
        %s303 = scalar_select %p302, %s299, 0
        %s304 = smul.addr %s301, 3
        %s305 = sadd.s32 %s303, %s304
        %s306 = smul.addr %s305, 8
        %s307 = scalar_lea.vmem %s2, %s306
        %s308 = smul.u32 %s22, 2
        %s309 = sadd.s32 %s308, 1
        %s310 = sadd.s32 %s20, %s23
      $region28: #{downsampling_forward.2} parent=19 // pred_fallthru
        _
      // Predicated region
      $region29: #{downsampling_forward.2} parent=19 // pred_check
        %p311 = pneg %p159
      $region30: #{downsampling_forward.2} parent=19 // pred_check_branch
        %313 = sbr.rel (%p311) target = $region32
      $region31: #{downsampling_forward.2} parent=19 // pred_region
        %s314 = smul.u32 %s22, 2
        %s315 = sadd.s32 %s314, 2
        %s316 = sadd.s32 %s20, %s23
        %p317 = scmp.lt.s32.totalorder %s315, 17
        %s318 = scalar_select %p317, %s315, 17
        %p319 = scmp.lt.s32.totalorder %s316, 0
        %s320 = scalar_select %p319, %s316, 0
        %s321 = smul.addr %s318, 3
        %s322 = sadd.s32 %s320, %s321
        %s323 = smul.addr %s322, 8
        %s324 = scalar_lea.vmem %s3, %s323
        %s325 = smul.u32 %s22, 2
        %s326 = sadd.s32 %s325, 2
        %s327 = sadd.s32 %s20, %s23
      $region32: #{downsampling_forward.2} parent=19 // pred_fallthru
        _
    $region20: #{downsampling_forward.2} parent=5 // pred_fallthru
      _
    %p328 = scmp.le.s32.totalorder 1, %s13
    %p329 = scmp.lt.s32.totalorder %s13, 9
    %p330 = pnand %p328, %p329
    %p331 = pneg %p330
    // Predicated region
    $region33: #{downsampling_forward.2} parent=5 // pred_check
      _
    $region34: #{downsampling_forward.2} parent=5 // pred_check_branch
      %333 = sbr.rel (%p330) target = $region36
    $region35: #{downsampling_forward.2} parent=5 // pred_region
      %s334 = ssub.s32 %s13, 1
      %p335 = scmp.lt.s32.totalorder %s25, 0
      %s336 = scalar_select %p335, %s25, 0
      %s337 = smul.addr %s336, 8
      %s338 = scalar_lea.vmem %s0, %s337
      %p339 = pneg %p65
      %p340 = pneg %p62
      %s341 = smul.u32 %s26, 2
      %s342 = sadd.s32 %s24, %s27
      %p343 = scmp.lt.s32.totalorder %s341, 17
      %s344 = scalar_select %p343, %s341, 17
      %p345 = scmp.lt.s32.totalorder %s342, 0
      %s346 = scalar_select %p345, %s342, 0
      %s347 = smul.addr %s344, 3
      %s348 = sadd.s32 %s346, %s347
      %s349 = smul.addr %s348, 8
      %s350 = scalar_lea.vmem %s1, %s349
      %p351 = pneg %p97
      %p352 = pneg %p94
      %s353 = smul.u32 %s26, 2
      %s354 = sadd.s32 %s353, 1
      %s355 = sadd.s32 %s24, %s27
      %p356 = scmp.lt.s32.totalorder %s354, 17
      %s357 = scalar_select %p356, %s354, 17
      %p358 = scmp.lt.s32.totalorder %s355, 0
      %s359 = scalar_select %p358, %s355, 0
      %s360 = smul.addr %s357, 3
      %s361 = sadd.s32 %s359, %s360
      %s362 = smul.addr %s361, 8
      %s363 = scalar_lea.vmem %s2, %s362
      %p364 = pneg %p131
      %p365 = pneg %p128
      %s366 = smul.u32 %s26, 2
      %s367 = sadd.s32 %s366, 2
      %s368 = sadd.s32 %s24, %s27
      %p369 = scmp.lt.s32.totalorder %s367, 17
      %s370 = scalar_select %p369, %s367, 17
      %p371 = scmp.lt.s32.totalorder %s368, 0
      %s372 = scalar_select %p371, %s368, 0
      %s373 = smul.addr %s370, 3
      %s374 = sadd.s32 %s372, %s373
      %s375 = smul.addr %s374, 8
      %s376 = scalar_lea.vmem %s3, %s375
      %p377 = pneg %p165
      %p378 = pneg %p162
      %p379 = pneg %p197
      %p380 = pneg %p194
      %s381 = sadd.s32 %s24, %s27
      %p382 = scmp.lt.s32.totalorder %s26, 7
      %s383 = scalar_select %p382, %s26, 7
      %p384 = scmp.lt.s32.totalorder %s25, 0
      %s385 = scalar_select %p384, %s25, 0
      %p386 = scmp.lt.s32.totalorder %s381, 0
      %s387 = scalar_select %p386, %s381, 0
      %s388 = sadd.s32 %s387, %s385
      %s389 = sadd.s32 %s388, %s383
      %s390 = smul.addr %s389, 8
      %s391 = scalar_lea.vmem %s4, %s390
      %p392 = pneg %p225
      %p393 = pneg %p222
      %p394 = scmp.lt.s32.totalorder %s24, 0
      %s395 = scalar_select %p394, %s24, 0
      %p396 = scmp.lt.s32.totalorder %s25, 0
      %s397 = scalar_select %p396, %s25, 0
      %s398 = sadd.s32 %s397, %s395
      %s399 = smul.addr %s398, 8
      %s400 = scalar_lea.vmem %s5, %s399
      %p401 = pneg %p253
      %p402 = pneg %p250
      %p403 = scmp.lt.s32.totalorder %s24, 0
      %s404 = scalar_select %p403, %s24, 0
      %p405 = scmp.lt.s32.totalorder %s25, 0
      %s406 = scalar_select %p405, %s25, 0
      %s407 = sadd.s32 %s406, %s404
      %s408 = smul.addr %s407, 8
      %s409 = scalar_lea.vmem %s6, %s408
      %p410 = scmp.lt.s32.totalorder %s25, 0
      %s411 = scalar_select %p410, %s25, 0
      %s412 = smul.addr %s411, 8
      %s413 = scalar_lea.vmem %s0, %s412
      %s414 = smul.u32 %s26, 2
      %s415 = sadd.s32 %s24, %s27
      %p416 = scmp.lt.s32.totalorder %s414, 17
      %s417 = scalar_select %p416, %s414, 17
      %p418 = scmp.lt.s32.totalorder %s415, 0
      %s419 = scalar_select %p418, %s415, 0
      %s420 = smul.addr %s417, 3
      %s421 = sadd.s32 %s419, %s420
      %s422 = smul.addr %s421, 8
      %s423 = scalar_lea.vmem %s1, %s422
      %s424 = smul.u32 %s26, 2
      %s425 = sadd.s32 %s24, %s27
      %s426 = smul.u32 %s26, 2
      %s427 = sadd.s32 %s426, 1
      %s428 = sadd.s32 %s24, %s27
      %p429 = scmp.lt.s32.totalorder %s427, 17
      %s430 = scalar_select %p429, %s427, 17
      %p431 = scmp.lt.s32.totalorder %s428, 0
      %s432 = scalar_select %p431, %s428, 0
      %s433 = smul.addr %s430, 3
      %s434 = sadd.s32 %s432, %s433
      %s435 = smul.addr %s434, 8
      %s436 = scalar_lea.vmem %s2, %s435
      %s437 = smul.u32 %s26, 2
      %s438 = sadd.s32 %s437, 1
      %s439 = sadd.s32 %s24, %s27
      %s440 = smul.u32 %s26, 2
      %s441 = sadd.s32 %s440, 2
      %s442 = sadd.s32 %s24, %s27
      %p443 = scmp.lt.s32.totalorder %s441, 17
      %s444 = scalar_select %p443, %s441, 17
      %p445 = scmp.lt.s32.totalorder %s442, 0
      %s446 = scalar_select %p445, %s442, 0
      %s447 = smul.addr %s444, 3
      %s448 = sadd.s32 %s446, %s447
      %s449 = smul.addr %s448, 8
      %s450 = scalar_lea.vmem %s3, %s449
      %s451 = smul.u32 %s26, 2
      %s452 = sadd.s32 %s451, 2
      %s453 = sadd.s32 %s24, %s27
      %s454 = sadd.s32 %s24, %s27
      %p455 = scmp.lt.s32.totalorder %s26, 7
      %s456 = scalar_select %p455, %s26, 7
      %p457 = scmp.lt.s32.totalorder %s25, 0
      %s458 = scalar_select %p457, %s25, 0
      %p459 = scmp.lt.s32.totalorder %s454, 0
      %s460 = scalar_select %p459, %s454, 0
      %s461 = sadd.s32 %s460, %s458
      %s462 = sadd.s32 %s461, %s456
      %s463 = smul.addr %s462, 8
      %s464 = scalar_lea.vmem %s4, %s463
      %s465 = sadd.s32 %s24, %s27
      %p466 = scmp.lt.s32.totalorder %s24, 0
      %s467 = scalar_select %p466, %s24, 0
      %p468 = scmp.lt.s32.totalorder %s25, 0
      %s469 = scalar_select %p468, %s25, 0
      %s470 = sadd.s32 %s469, %s467
      %s471 = smul.addr %s470, 8
      %s472 = scalar_lea.vmem %s5, %s471
      %p473 = scmp.lt.s32.totalorder %s24, 0
      %s474 = scalar_select %p473, %s24, 0
      %p475 = scmp.lt.s32.totalorder %s25, 0
      %s476 = scalar_select %p475, %s25, 0
      %s477 = sadd.s32 %s476, %s474
      %s478 = smul.addr %s477, 8
      %s479 = scalar_lea.vmem %s6, %s478
      %p480 = scmp.eq.s32.totalorder %s26, 0
      %p481 = scmp.eq.s32.totalorder %s27, 0
      %p482 = pnand %p480, %p481
      %p483 = pneg %p482
      // Predicated region
      $region37: #{downsampling_forward.2} parent=35 // pred_check
        _
      $region38: #{downsampling_forward.2} parent=35 // pred_check_branch
        %485 = sbr.rel (%p482) target = $region40
      $region39: #{downsampling_forward.2} parent=35 // pred_region
        %486 = vst [vmem:[%s472] sm:$0xff] 0.0
        %487 = vst [vmem:[%s479] sm:$0xff] 0.0
      $region40: #{downsampling_forward.2} parent=35 // pred_fallthru
        _
      %v488 = vld [vmem:[%s413] sm:$0xff]
      %v489 = vld [vmem:[%s423] sm:$0xff]
      %v490 = vld [vmem:[%s423 + $0x8] sm:$0xff]
      %v491 = vld [vmem:[%s423 + $0x10] sm:$0xff]
      %s492 = scalar_lea.vmem %s413, 8
      %v493 = vld [vmem:[%s492] sm:$0xff]
      %v494 = vld [vmem:[%s436] sm:$0xff]
      %v495 = vld [vmem:[%s436 + $0x8] sm:$0xff]
      %v496 = vld [vmem:[%s436 + $0x10] sm:$0xff]
      %vm497 = vcmask 195584
      %v499 = vsel %vm497, %v493, 0
      %501 = vmatprep.subr.mxu0 0.0
      %502 = vmatpush1.msra.mxu0 %v494
      %503 = vmatprep.subr.mxu0 0.0
      %504 = vmatpush1.msra.mxu0 %v495
      %505 = vmatprep.subr.mxu0 0.0
      %506 = vmatpush1.msra.mxu0 %v496
      %507 = vmatprep.subr.mxu0 0.0
      %508 = vmatpush1.msra.mxu0 0.0
      %509 = vmatprep.subr.mxu0 0.0
      %510 = vmatpush1.msra.mxu0 0.0
      %511 = vmatprep.subr.mxu0 0.0
      %512 = vmatpush1.msra.mxu0 0.0
      %513 = vmatprep.subr.mxu0 0.0
      %514 = vmatpush1.msra.mxu0 0.0
      %515 = vmatprep.subr.mxu0 0.0
      %516 = vmatpush1.msra.mxu0 0.0
      %517 = vmatprep.subr.mxu0 0.0
      %518 = vmatpush1.msra.mxu0 0.0
      %519 = vmatprep.subr.mxu0 0.0
      %520 = vmatpush1.msra.mxu0 0.0
      %521 = vmatprep.subr.mxu0 0.0
      %522 = vmatpush1.msra.mxu0 0.0
      %523 = vmatprep.subr.mxu0 0.0
      %524 = vmatpush1.msra.mxu0 0.0
      %525 = vmatprep.subr.mxu0 0.0
      %526 = vmatpush1.msra.mxu0 0.0
      %527 = vmatprep.subr.mxu0 0.0
      %528 = vmatpush1.msra.mxu0 0.0
      %529 = vmatprep.subr.mxu0 0.0
      %530 = vmatpush1.msra.mxu0 0.0
      %531 = vmatprep.subr.mxu0 0.0
      %532 = vmatpush1.msra.mxu0 0.0
      %533 = vmatprep.subr.mxu0 0.0
      %534 = vmatpush1.msra.mxu0 0.0
      %535 = vmatprep.subr.mxu0 0.0
      %536 = vmatpush1.msra.mxu0 0.0
      %537 = vmatprep.subr.mxu0 0.0
      %538 = vmatpush1.msra.mxu0 0.0
      %539 = vmatprep.subr.mxu0 0.0
      %540 = vmatpush1.msra.mxu0 0.0
      %541 = vmatprep.subr.mxu0 0.0
      %542 = vmatpush1.msra.mxu0 0.0
      %543 = vmatprep.subr.mxu0 0.0
      %544 = vmatpush1.msra.mxu0 0.0
      %545 = vmatprep.subr.mxu0 0.0
      %546 = vmatpush1.msra.mxu0 0.0
      %547 = vmatprep.subr.mxu0 0.0
      %548 = vmatpush1.msra.mxu0 0.0
      %549 = vmatprep.subr.mxu0 0.0
      %550 = vmatpush1.msra.mxu0 0.0
      %551 = vmatprep.subr.mxu0 0.0
      %552 = vmatpush1.msra.mxu0 0.0
      %553 = vmatprep.subr.mxu0 0.0
      %554 = vmatpush1.msra.mxu0 0.0
      %555 = vmatprep.subr.mxu0 0.0
      %556 = vmatpush1.msra.mxu0 0.0
      %557 = vmatprep.subr.mxu0 0.0
      %558 = vmatpush1.msra.mxu0 0.0
      %559 = vmatprep.subr.mxu0 0.0
      %560 = vmatpush1.msra.mxu0 0.0
      %561 = vmatprep.subr.mxu0 0.0
      %562 = vmatpush1.msra.mxu0 0.0
      %563 = vmatprep.subr.mxu0 0.0
      %564 = vmatpush1.msra.mxu0 0.0
      %565 = vmatprep.mubr.f32.mxu0 0.0
      %566 = vmatmul.mubr.f32.gmra.mrb[0].mxu0 %v499
      %v567 = vpop.f32.mrb[0].mxu0
      %v568 = vadd.f32 0.0, %v567
      %v569 = vpop.f32.mrb[0].mxu0
      %570 = vdwg.mxu0
      %v572 = vsel %vm497, %v488, 0
      %574 = vmatprep.subr.mxu0 0.0
      %575 = vmatpush1.msra.mxu0 %v489
      %576 = vmatprep.subr.mxu0 0.0
      %577 = vmatpush1.msra.mxu0 %v490
      %578 = vmatprep.subr.mxu0 0.0
      %579 = vmatpush1.msra.mxu0 %v491
      %580 = vmatprep.subr.mxu0 0.0
      %581 = vmatpush1.msra.mxu0 0.0
      %582 = vmatprep.subr.mxu0 0.0
      %583 = vmatpush1.msra.mxu0 0.0
      %584 = vmatprep.subr.mxu0 0.0
      %585 = vmatpush1.msra.mxu0 0.0
      %586 = vmatprep.subr.mxu0 0.0
      %587 = vmatpush1.msra.mxu0 0.0
      %588 = vmatprep.subr.mxu0 0.0
      %589 = vmatpush1.msra.mxu0 0.0
      %590 = vmatprep.subr.mxu0 0.0
      %591 = vmatpush1.msra.mxu0 0.0
      %592 = vmatprep.subr.mxu0 0.0
      %593 = vmatpush1.msra.mxu0 0.0
      %594 = vmatprep.subr.mxu0 0.0
      %595 = vmatpush1.msra.mxu0 0.0
      %596 = vmatprep.subr.mxu0 0.0
      %597 = vmatpush1.msra.mxu0 0.0
      %598 = vmatprep.subr.mxu0 0.0
      %599 = vmatpush1.msra.mxu0 0.0
      %600 = vmatprep.subr.mxu0 0.0
      %601 = vmatpush1.msra.mxu0 0.0
      %602 = vmatprep.subr.mxu0 0.0
      %603 = vmatpush1.msra.mxu0 0.0
      %604 = vmatprep.subr.mxu0 0.0
      %605 = vmatpush1.msra.mxu0 0.0
      %606 = vmatprep.subr.mxu0 0.0
      %607 = vmatpush1.msra.mxu0 0.0
      %608 = vmatprep.subr.mxu0 0.0
      %609 = vmatpush1.msra.mxu0 0.0
      %610 = vmatprep.subr.mxu0 0.0
      %611 = vmatpush1.msra.mxu0 0.0
      %612 = vmatprep.subr.mxu0 0.0
      %613 = vmatpush1.msra.mxu0 0.0
      %614 = vmatprep.subr.mxu0 0.0
      %615 = vmatpush1.msra.mxu0 0.0
      %616 = vmatprep.subr.mxu0 0.0
      %617 = vmatpush1.msra.mxu0 0.0
      %618 = vmatprep.subr.mxu0 0.0
      %619 = vmatpush1.msra.mxu0 0.0
      %620 = vmatprep.subr.mxu0 0.0
      %621 = vmatpush1.msra.mxu0 0.0
      %622 = vmatprep.subr.mxu0 0.0
      %623 = vmatpush1.msra.mxu0 0.0
      %624 = vmatprep.subr.mxu0 0.0
      %625 = vmatpush1.msra.mxu0 0.0
      %626 = vmatprep.subr.mxu0 0.0
      %627 = vmatpush1.msra.mxu0 0.0
      %628 = vmatprep.subr.mxu0 0.0
      %629 = vmatpush1.msra.mxu0 0.0
      %630 = vmatprep.subr.mxu0 0.0
      %631 = vmatpush1.msra.mxu0 0.0
      %632 = vmatprep.subr.mxu0 0.0
      %633 = vmatpush1.msra.mxu0 0.0
      %634 = vmatprep.subr.mxu0 0.0
      %635 = vmatpush1.msra.mxu0 0.0
      %636 = vmatprep.subr.mxu0 0.0
      %637 = vmatpush1.msra.mxu0 0.0
      %638 = vmatprep.mubr.f32.mxu0 0.0
      %639 = vmatmul.mubr.f32.gmra.mrb[0].mxu0 %v572
      %v640 = vpop.f32.mrb[0].mxu0
      %v641 = vadd.f32 %v568, %v640
      %v642 = vpop.f32.mrb[0].mxu0
      %643 = vdwg.mxu0
      %s644 = scalar_lea.vmem %s413, 16
      %v645 = vld [vmem:[%s644] sm:$0xff]
      %v646 = vld [vmem:[%s450] sm:$0xff]
      %v647 = vld [vmem:[%s450 + $0x8] sm:$0xff]
      %v648 = vld [vmem:[%s450 + $0x10] sm:$0xff]
      %v650 = vsel %vm497, %v645, 0
      %652 = vmatprep.subr.mxu0 0.0
      %653 = vmatpush1.msra.mxu0 %v646
      %654 = vmatprep.subr.mxu0 0.0
      %655 = vmatpush1.msra.mxu0 %v647
      %656 = vmatprep.subr.mxu0 0.0
      %657 = vmatpush1.msra.mxu0 %v648
      %658 = vmatprep.subr.mxu0 0.0
      %659 = vmatpush1.msra.mxu0 0.0
      %660 = vmatprep.subr.mxu0 0.0
      %661 = vmatpush1.msra.mxu0 0.0
      %662 = vmatprep.subr.mxu0 0.0
      %663 = vmatpush1.msra.mxu0 0.0
      %664 = vmatprep.subr.mxu0 0.0
      %665 = vmatpush1.msra.mxu0 0.0
      %666 = vmatprep.subr.mxu0 0.0
      %667 = vmatpush1.msra.mxu0 0.0
      %668 = vmatprep.subr.mxu0 0.0
      %669 = vmatpush1.msra.mxu0 0.0
      %670 = vmatprep.subr.mxu0 0.0
      %671 = vmatpush1.msra.mxu0 0.0
      %672 = vmatprep.subr.mxu0 0.0
      %673 = vmatpush1.msra.mxu0 0.0
      %674 = vmatprep.subr.mxu0 0.0
      %675 = vmatpush1.msra.mxu0 0.0
      %676 = vmatprep.subr.mxu0 0.0
      %677 = vmatpush1.msra.mxu0 0.0
      %678 = vmatprep.subr.mxu0 0.0
      %679 = vmatpush1.msra.mxu0 0.0
      %680 = vmatprep.subr.mxu0 0.0
      %681 = vmatpush1.msra.mxu0 0.0
      %682 = vmatprep.subr.mxu0 0.0
      %683 = vmatpush1.msra.mxu0 0.0
      %684 = vmatprep.subr.mxu0 0.0
      %685 = vmatpush1.msra.mxu0 0.0
      %686 = vmatprep.subr.mxu0 0.0
      %687 = vmatpush1.msra.mxu0 0.0
      %688 = vmatprep.subr.mxu0 0.0
      %689 = vmatpush1.msra.mxu0 0.0
      %690 = vmatprep.subr.mxu0 0.0
      %691 = vmatpush1.msra.mxu0 0.0
      %692 = vmatprep.subr.mxu0 0.0
      %693 = vmatpush1.msra.mxu0 0.0
      %694 = vmatprep.subr.mxu0 0.0
      %695 = vmatpush1.msra.mxu0 0.0
      %696 = vmatprep.subr.mxu0 0.0
      %697 = vmatpush1.msra.mxu0 0.0
      %698 = vmatprep.subr.mxu0 0.0
      %699 = vmatpush1.msra.mxu0 0.0
      %700 = vmatprep.subr.mxu0 0.0
      %701 = vmatpush1.msra.mxu0 0.0
      %702 = vmatprep.subr.mxu0 0.0
      %703 = vmatpush1.msra.mxu0 0.0
      %704 = vmatprep.subr.mxu0 0.0
      %705 = vmatpush1.msra.mxu0 0.0
      %706 = vmatprep.subr.mxu0 0.0
      %707 = vmatpush1.msra.mxu0 0.0
      %708 = vmatprep.subr.mxu0 0.0
      %709 = vmatpush1.msra.mxu0 0.0
      %710 = vmatprep.subr.mxu0 0.0
      %711 = vmatpush1.msra.mxu0 0.0
      %712 = vmatprep.subr.mxu0 0.0
      %713 = vmatpush1.msra.mxu0 0.0
      %714 = vmatprep.subr.mxu0 0.0
      %715 = vmatpush1.msra.mxu0 0.0
      %716 = vmatprep.mubr.f32.mxu0 0.0
      %717 = vmatmul.mubr.f32.gmra.mrb[0].mxu0 %v650
      %v718 = vpop.f32.mrb[0].mxu0
      %v719 = vadd.f32 0.0, %v718
      %v720 = vpop.f32.mrb[0].mxu0
      %721 = vdwg.mxu0
      %v722 = vadd.f32 %v641, %v719
      %723 = vst [vmem:[%s464] sm:$0xff] %v722
      %v724 = vld [vmem:[%s472] sm:$0xff]
      %725 = vadd.xlane.f32.xlu0 %v722
      %v726 = vpop.xlane.xlu0 %725
      %v727 = vadd.f32 %v724, %v726
      %728 = vst [vmem:[%s472] sm:$0xff] %v727
      %v729 = vld [vmem:[%s479] sm:$0xff]
      %v730 = vmul.f32 %v722, %v722
      %731 = vadd.xlane.f32.xlu0 %v730
      %v732 = vpop.xlane.xlu0 %731
      %v733 = vadd.f32 %v729, %v732
      %734 = vst [vmem:[%s479] sm:$0xff] %v733
      %s735 = sadd.s32 %s24, %s27
      %p736 = scmp.lt.s32.totalorder %s26, 7
      %s737 = scalar_select %p736, %s26, 7
      %p738 = scmp.lt.s32.totalorder %s25, 0
      %s739 = scalar_select %p738, %s25, 0
      %p740 = scmp.lt.s32.totalorder %s735, 0
      %s741 = scalar_select %p740, %s735, 0
      %s742 = sadd.s32 %s741, %s739
      %s743 = sadd.s32 %s742, %s737
      %s744 = smul.addr %s743, 8
      %s745 = scalar_lea.vmem %s4, %s744
      %p746 = scmp.lt.s32.totalorder %s24, 0
      %s747 = scalar_select %p746, %s24, 0
      %p748 = scmp.lt.s32.totalorder %s25, 0
      %s749 = scalar_select %p748, %s25, 0
      %s750 = sadd.s32 %s749, %s747
      %s751 = smul.addr %s750, 8
      %s752 = scalar_lea.vmem %s5, %s751
      %p753 = scmp.lt.s32.totalorder %s24, 0
      %s754 = scalar_select %p753, %s24, 0
      %p755 = scmp.lt.s32.totalorder %s25, 0
      %s756 = scalar_select %p755, %s25, 0
      %s757 = sadd.s32 %s756, %s754
      %s758 = smul.addr %s757, 8
      %s759 = scalar_lea.vmem %s6, %s758
      // Predicated region
      $region41: #{downsampling_forward.2} parent=35 // pred_check
        %p760 = pneg %p194
      $region42: #{downsampling_forward.2} parent=35 // pred_check_branch
        %762 = sbr.rel (%p760) target = $region44
      $region43: #{downsampling_forward.2} parent=35 // pred_region
        %s763 = sadd.s32 %s24, %s27
      $region44: #{downsampling_forward.2} parent=35 // pred_fallthru
        _
      // Predicated region
      $region45: #{downsampling_forward.2} parent=35 // pred_check
        %p764 = pneg %p222
      $region46: #{downsampling_forward.2} parent=35 // pred_check_branch
        %766 = sbr.rel (%p764) target = $region48
      $region47: #{downsampling_forward.2} parent=35 // pred_region
        _
      $region48: #{downsampling_forward.2} parent=35 // pred_fallthru
        _
      // Predicated region
      $region49: #{downsampling_forward.2} parent=35 // pred_check
        %p767 = pneg %p250
      $region50: #{downsampling_forward.2} parent=35 // pred_check_branch
        %769 = sbr.rel (%p767) target = $region52
      $region51: #{downsampling_forward.2} parent=35 // pred_region
        _
      $region52: #{downsampling_forward.2} parent=35 // pred_fallthru
        _
      // Predicated region
      $region53: #{downsampling_forward.2} parent=35 // pred_check
        %p770 = pneg %p222
      $region54: #{downsampling_forward.2} parent=35 // pred_check_branch
        %772 = sbr.rel (%p770) target = $region56
      $region55: #{downsampling_forward.2} parent=35 // pred_region
        %p773 = scmp.lt.s32.totalorder %s24, 0
        %s774 = scalar_select %p773, %s24, 0
        %p775 = scmp.lt.s32.totalorder %s25, 0
        %s776 = scalar_select %p775, %s25, 0
        %s777 = sadd.s32 %s776, %s774
        %s778 = smul.addr %s777, 8
        %s779 = scalar_lea.vmem %s5, %s778
      $region56: #{downsampling_forward.2} parent=35 // pred_fallthru
        _
      // Predicated region
      $region57: #{downsampling_forward.2} parent=35 // pred_check
        %p780 = pneg %p250
      $region58: #{downsampling_forward.2} parent=35 // pred_check_branch
        %782 = sbr.rel (%p780) target = $region60
      $region59: #{downsampling_forward.2} parent=35 // pred_region
        %p783 = scmp.lt.s32.totalorder %s24, 0
        %s784 = scalar_select %p783, %s24, 0
        %p785 = scmp.lt.s32.totalorder %s25, 0
        %s786 = scalar_select %p785, %s25, 0
        %s787 = sadd.s32 %s786, %s784
        %s788 = smul.addr %s787, 8
        %s789 = scalar_lea.vmem %s6, %s788
      $region60: #{downsampling_forward.2} parent=35 // pred_fallthru
        _
    $region36: #{downsampling_forward.2} parent=5 // pred_fallthru
      _
    %p790 = scmp.le.s32.totalorder 2, %s13
    // Predicated region
    $region61: #{downsampling_forward.2} parent=5 // pred_check
      %p791 = pneg %p790
    $region62: #{downsampling_forward.2} parent=5 // pred_check_branch
      %793 = sbr.rel (%p791) target = $region64
    $region63: #{downsampling_forward.2} parent=5 // pred_region
      %s794 = ssub.s32 %s13, 2
      // Predicated region
      $region65: #{downsampling_forward.2} parent=63 // pred_check
        %p795 = pneg %p200
      $region66: #{downsampling_forward.2} parent=63 // pred_check_branch
        %797 = sbr.rel (%p795) target = $region68
      $region67: #{downsampling_forward.2} parent=63 // pred_region
        %s798 = sadd.s32 %s28, %s31
        %p799 = scmp.lt.s32.totalorder %s30, 7
        %s800 = scalar_select %p799, %s30, 7
        %p801 = scmp.lt.s32.totalorder %s29, 0
        %s802 = scalar_select %p801, %s29, 0
        %p803 = scmp.lt.s32.totalorder %s798, 0
        %s804 = scalar_select %p803, %s798, 0
        %s805 = sadd.s32 %s804, %s802
        %s806 = sadd.s32 %s805, %s800
        %s807 = smul.addr %s806, 8
        %s808 = scalar_lea.vmem %s4, %s807
      $region68: #{downsampling_forward.2} parent=63 // pred_fallthru
        _
    $region64: #{downsampling_forward.2} parent=5 // pred_fallthru
      _
  $region6: #{downsampling_forward.2} parent=0 // loop_footer
    %s17 = sadd.s32 1, %s13
  $region7: #{downsampling_forward.2} parent=0 // loop_footer_branch
    %12 = sbr.rel target = $region3
  $region8: #{downsampling_forward.2} parent=0 // loop_exit
    _

</llo_original>
